<compile_context>
chip_gen: v5e
topology: v5e:2x2
jax: 0.10.0
libtpu: 0.0.40
codegen_flags: <defaults>
</compile_context>

<pallas_src>
import jax
import jax.numpy as jnp
from jax.experimental import pallas as pl
from jax.experimental.pallas import tpu as pltpu


def _round_up(n, m):
    return ((n + m - 1) // m) * m


def _pack_layout(Cin, Cout, K, H, NC):
    """Row offsets / total shape of the single packed f32 parameter buffer."""
    H3 = 3 * H
    entries = [
        ("cwi", K * Cin, Cout),   # im2col conv weight  (K*Cin, Cout)
        ("cb",  1,       Cout),   # conv bias           (1, Cout)
        ("wih", Cout,    H3),     # GRU W_ih fused      (Cout, 3H), gates r|z|n
        ("whh", H,       H3),     # GRU W_hh fused      (H, 3H)
        ("bx",  1,       H3),     # b_ih + [b_hh_r, b_hh_z, 0]   (1, 3H)
        ("bhn", 1,       H),      # b_hh_n              (1, H)
        ("fcw", H,       NC),     # FC weight           (H, NC)
        ("fcb", 1,       NC),     # FC bias             (1, NC)
    ]
    width = _round_up(max(c for _, _, c in entries), 128)   # lane-align to 128
    offs, row = {}, 0
    for name, rows, _ in entries:
        offs[name] = row
        row += _round_up(rows, 8)                           # sublane-align each param
    return offs, _round_up(row, 8), width


def make_cnn_gru_kernel(B, L, Cin, Cout, K, H, NC, offs):
    pad = K // 2                       # Conv1d padding (stride=1, dilation=1 assumed)
    Lout = L + 2 * pad - K + 1         # Conv1d output length
    T = Lout // 2                      # MaxPool1d(2), ceil_mode=False (floor)
    H3 = 3 * H
    f32 = jnp.float32

    def kernel(x_ref, params_ref, o_ref):
        # ---- static views into the single packed parameter buffer (zero cost) ----
        cwi = params_ref[offs["cwi"]:offs["cwi"] + K * Cin, 0:Cout]
        cb  = params_ref[offs["cb"]:offs["cb"] + 1,         0:Cout]
        wih = params_ref[offs["wih"]:offs["wih"] + Cout,    0:H3]
        whh = params_ref[offs["whh"]:offs["whh"] + H,       0:H3]
        bx  = params_ref[offs["bx"]:offs["bx"] + 1,         0:H3]
        bhn = params_ref[offs["bhn"]:offs["bhn"] + 1,       0:H]
        fcw = params_ref[offs["fcw"]:offs["fcw"] + H, :]    # full 128 lanes (zero padded)
        fcb = params_ref[offs["fcb"]:offs["fcb"] + 1, :]

        # ---- Conv1d (+bias) + ReLU as ONE im2col matmul; halo built in-kernel ----
        x = x_ref[...]                                              # (B, L, Cin)
        if pad:
            z = jnp.zeros((B, pad, Cin), f32)
            xp = jnp.concatenate([z, x, z], axis=1)                 # (B, L+2p, Cin)
        else:
            xp = x
        cols = jnp.concatenate([xp[:, k:k + Lout, :] for k in range(K)], axis=2)
        conv = jnp.maximum(
            jnp.dot(cols.reshape(B * Lout, K * Cin), cwi,
                    preferred_element_type=f32) + cb, 0.0)          # (B*Lout, Cout)

        # ---- MaxPool1d(2), hoisted out of the recurrence ----
        conv3 = conv.reshape(B, Lout, Cout)
        pooled = jnp.max(conv3[:, :2 * T, :].reshape(B, T, 2, Cout), axis=2)  # (B,T,Cout)

        # ---- all input-hidden gate projections in ONE matmul (r/z biases pre-summed) ----
        x_all = (jnp.dot(pooled.reshape(B * T, Cout), wih,
                         preferred_element_type=f32) + bx).reshape(B, T, H3)
        # gate extraction hoisted out of the serial loop
        xr = x_all[:, :, 0:H]
        xz = x_all[:, :, H:2 * H]
        xn = x_all[:, :, 2 * H:3 * H]

        # ---- GRU recurrence: one hidden matmul per step, fully unrolled ----
        bhn_b = jnp.broadcast_to(bhn, (B, H))        # hoisted broadcast
        h = jnp.zeros((B, H), f32)
        for t in range(T):                           # T static & tiny -> full unroll
            hp = jnp.dot(h, whh, preferred_element_type=f32)        # (B, 3H)
            # sigmoid(v) = 0.5*tanh(0.5*v) + 0.5  -> EUP tanh, no divide on crit path
            r = 0.5 * jnp.tanh(0.5 * (xr[:, t, :] + hp[:, 0:H])) + 0.5
            z = 0.5 * jnp.tanh(0.5 * (xz[:, t, :] + hp[:, H:2 * H])) + 0.5
            n = jnp.tanh(xn[:, t, :] + r * (hp[:, 2 * H:3 * H] + bhn_b))
            h = (1.0 - z) * n + z * h                # == lstm_out[:, -1, :] after loop

        # ---- Dropout = identity at inference; FC head, lane-dense (B,128) store ----
        # (fcw/fcb are exactly zero beyond column NC, so the extra lanes store zeros.)
        o_ref[...] = jnp.dot(h, fcw, preferred_element_type=f32) + fcb

    return kernel


def cnn_lstm_forward(x, packed_params, dims):
    """x: (B, L, Cin) UNPADDED.  packed_params/dims come from repack_for_kernel."""
    Cin, Cout, K, H, NC = dims
    B, L, _ = x.shape
    offs, rows, width = _pack_layout(Cin, Cout, K, H, NC)
    assert packed_params.shape == (rows, width)
    kernel = make_cnn_gru_kernel(B, L, Cin, Cout, K, H, NC, offs)
    vmem = pl.BlockSpec(memory_space=pltpu.MemorySpace.VMEM)
    # Gridless, fully VMEM-resident (tiny shapes): 2 input DMAs (x + packed params),
    # one lane-dense (B, 128) store.  If B/L scale, add a grid over B with
    # dimension_semantics=("parallel",) sized for v7x's 64 MiB VMEM, and set
    # vmem_limit_bytes explicitly on v5e.
    out = pl.pallas_call(
        kernel,
        out_shape=jax.ShapeDtypeStruct((B, width), jnp.float32),
        in_specs=[vmem, vmem],
        out_specs=vmem,
    )(x, packed_params)
    return out[:, :NC]


def init_torch_params(key, Cin, Cout, K, H, NC):
    """Parameters in the exact PyTorch layouts (Conv1d / GRU / Linear)."""
    ks = jax.random.split(key, 8)
    u = lambda k, shape, s: jax.random.uniform(k, shape, jnp.float32, -s, s)
    conv_w = u(ks[0], (Cout, Cin, K), 0.3)   # Conv1d (C_out, C_in, K)
    conv_b = u(ks[1], (Cout,), 0.3)
    w_ih = u(ks[2], (3 * H, Cout), 0.2)      # GRU (3H, in), gate order r|z|n
    w_hh = u(ks[3], (3 * H, H), 0.2)
    b_ih = u(ks[4], (3 * H,), 0.2)
    b_hh = u(ks[5], (3 * H,), 0.2)
    fc_w = u(ks[6], (NC, H), 0.2)            # Linear (out, in)
    fc_b = u(ks[7], (NC,), 0.2)
    return conv_w, conv_b, w_ih, w_hh, b_ih, b_hh, fc_w, fc_b


def repack_for_kernel(tp):
    """PyTorch layouts -> one packed kernel buffer (im2col conv weight, fused gates,
    pre-summed r/z hidden biases, lane/sublane aligned regions)."""
    conv_w, conv_b, w_ih, w_hh, b_ih, b_hh, fc_w, fc_b = tp
    Cout, Cin, K = conv_w.shape
    H = w_hh.shape[1]
    NC = fc_w.shape[0]
    offs, rows, width = _pack_layout(Cin, Cout, K, H, NC)
    pieces = {
        "cwi": jnp.transpose(conv_w, (2, 1, 0)).reshape(K * Cin, Cout),  # (K*Cin, Cout)
        "cb":  conv_b.reshape(1, Cout),
        "wih": w_ih.T,                                                   # (Cout, 3H)
        "whh": w_hh.T,                                                   # (H, 3H)
        "bx":  (b_ih + jnp.concatenate(
                    [b_hh[:2 * H], jnp.zeros((H,), jnp.float32)])).reshape(1, 3 * H),
        "bhn": b_hh[2 * H:].reshape(1, H),
        "fcw": fc_w.T,                                                   # (H, NC)
        "fcb": fc_b.reshape(1, NC),
    }
    packed = jnp.zeros((rows, width), jnp.float32)
    for name, arr in pieces.items():
        r = offs[name]
        packed = packed.at[r:r + arr.shape[0], :arr.shape[1]].set(arr)
    return packed, (Cin, Cout, K, H, NC)


def reference(x, tp):
    """Pure-JAX replica of CNNLSTM.forward (inference) using RAW PyTorch layouts."""
    conv_w, conv_b, w_ih, w_hh, b_ih, b_hh, fc_w, fc_b = tp
    Cout, Cin, K = conv_w.shape
    H = w_hh.shape[1]
    B, L, _ = x.shape
    p = K // 2
    xp = jnp.pad(x, ((0, 0), (p, p), (0, 0)))
    Lout = L + 2 * p - K + 1
    y = sum(jnp.einsum('blc,oc->blo', xp[:, k:k + Lout, :], conv_w[:, :, k])
            for k in range(K)) + conv_b[None, None, :]
    y = jnp.maximum(y, 0.0)
    T = Lout // 2
    pooled = jnp.maximum(y[:, 0:2 * T:2, :], y[:, 1:2 * T:2, :])
    h = jnp.zeros((B, H), jnp.float32)
    for t in range(T):
        xt = pooled[:, t, :]
        gi = xt @ w_ih.T + b_ih
        gh = h @ w_hh.T + b_hh
        r = jax.nn.sigmoid(gi[:, :H] + gh[:, :H])
        z = jax.nn.sigmoid(gi[:, H:2 * H] + gh[:, H:2 * H])
        n = jnp.tanh(gi[:, 2 * H:] + r * gh[:, 2 * H:])
        h = (1.0 - z) * n + z * h
    return h @ fc_w.T + fc_b[None, :]


if __name__ == "__main__":
    # small shapes consistent with the module:
    B, L, Cin = 2, 8, 4          # batch, seq_len, input_channels
    Cout, K = 8, 3               # cnn_out_channels, kernel_size
    H, NC = 32, 3                # lstm_hidden_size, num_classes (lstm_layers=1)

    key = jax.random.PRNGKey(0)
    kx, kp = jax.random.split(key)
    x = jax.random.normal(kx, (B, L, Cin), jnp.float32)
    torch_params = init_torch_params(kp, Cin, Cout, K, H, NC)
    packed, dims = repack_for_kernel(torch_params)

    out = jax.block_until_ready(cnn_lstm_forward(x, packed, dims))
    ref = reference(x, torch_params)

    assert out.shape == (B, NC), out.shape
    assert jnp.allclose(out, ref, atol=1e-4, rtol=1e-4), (out, ref)
    print("KERNEL_OK")
</pallas_src>

<mosaic_0001>
module attributes {stable_mosaic.version = 11 : i64} {
  func.func @kernel(%arg0: memref<2x8x4xf32, #tpu.memory_space<vmem>>, %arg1: memref<120x128xf32, #tpu.memory_space<vmem>>, %arg2: memref<2x128xf32, #tpu.memory_space<vmem>>) attributes {dimension_semantics = [], scalar_prefetch = 0 : i64, scratch_operands = 0 : i64, tpu.core_type = #tpu.core_type<tc>} {
    %c0 = arith.constant 0 : index
    %c0_0 = arith.constant 0 : index
    %0 = vector.load %arg1[%c0, %c0_0] : memref<120x128xf32, #tpu.memory_space<vmem>>, vector<12x8xf32>
    %c16 = arith.constant 16 : index
    %c0_1 = arith.constant 0 : index
    %1 = vector.load %arg1[%c16, %c0_1] : memref<120x128xf32, #tpu.memory_space<vmem>>, vector<1x8xf32>
    %c24 = arith.constant 24 : index
    %c0_2 = arith.constant 0 : index
    %2 = vector.load %arg1[%c24, %c0_2] : memref<120x128xf32, #tpu.memory_space<vmem>>, vector<8x96xf32>
    %c32 = arith.constant 32 : index
    %c0_3 = arith.constant 0 : index
    %3 = vector.load %arg1[%c32, %c0_3] : memref<120x128xf32, #tpu.memory_space<vmem>>, vector<32x96xf32>
    %c64 = arith.constant 64 : index
    %c0_4 = arith.constant 0 : index
    %4 = vector.load %arg1[%c64, %c0_4] : memref<120x128xf32, #tpu.memory_space<vmem>>, vector<1x96xf32>
    %c72 = arith.constant 72 : index
    %c0_5 = arith.constant 0 : index
    %5 = vector.load %arg1[%c72, %c0_5] : memref<120x128xf32, #tpu.memory_space<vmem>>, vector<1x32xf32>
    %c80 = arith.constant 80 : index
    %c0_6 = arith.constant 0 : index
    %6 = vector.load %arg1[%c80, %c0_6] : memref<120x128xf32, #tpu.memory_space<vmem>>, vector<32x128xf32>
    %c112 = arith.constant 112 : index
    %c0_7 = arith.constant 0 : index
    %7 = vector.load %arg1[%c112, %c0_7] : memref<120x128xf32, #tpu.memory_space<vmem>>, vector<1x128xf32>
    %c0_8 = arith.constant 0 : index
    %c0_9 = arith.constant 0 : index
    %c0_10 = arith.constant 0 : index
    %8 = vector.load %arg0[%c0_8, %c0_9, %c0_10] : memref<2x8x4xf32, #tpu.memory_space<vmem>>, vector<2x8x4xf32>
    %cst = arith.constant 0.000000e+00 : f32
    %9 = vector.broadcast %cst : f32 to vector<2x1x4xf32>
    %10 = tpu.concatenate %9, %8, %9 in 1 : vector<2x1x4xf32>, vector<2x8x4xf32>, vector<2x1x4xf32> -> vector<2x10x4xf32>
    %11 = vector.extract_strided_slice %10 {offsets = [0, 0, 0], sizes = [2, 8, 4], strides = [1, 1, 1]} : vector<2x10x4xf32> to vector<2x8x4xf32>
    %12 = vector.extract_strided_slice %10 {offsets = [0, 1, 0], sizes = [2, 8, 4], strides = [1, 1, 1]} : vector<2x10x4xf32> to vector<2x8x4xf32>
    %13 = vector.extract_strided_slice %10 {offsets = [0, 2, 0], sizes = [2, 8, 4], strides = [1, 1, 1]} : vector<2x10x4xf32> to vector<2x8x4xf32>
    %14 = tpu.concatenate %11, %12, %13 in 2 : vector<2x8x4xf32>, vector<2x8x4xf32>, vector<2x8x4xf32> -> vector<2x8x12xf32>
    %15 = vector.shape_cast %14 : vector<2x8x12xf32> to vector<16x12xf32>
    %cst_11 = arith.constant dense<0.000000e+00> : vector<16x8xf32>
    %16 = tpu.matmul %15, %0, %cst_11 {dimension_numbers = #tpu.dot_dimension_numbers<[1], [0], [0], [1], [0, 0, 1, 1], [], []>} : vector<16x12xf32>, vector<12x8xf32>, vector<16x8xf32> -> vector<16x8xf32>
    %17 = vector.broadcast %1 : vector<1x8xf32> to vector<16x8xf32>
    %18 = arith.addf %16, %17 : vector<16x8xf32>
    %cst_12 = arith.constant 0.000000e+00 : f32
    %19 = vector.broadcast %cst_12 : f32 to vector<16x8xf32>
    %20 = arith.maximumf %18, %19 : vector<16x8xf32>
    %21 = vector.shape_cast %20 : vector<16x8xf32> to vector<2x8x8xf32>
    %22 = vector.shape_cast %21 : vector<2x8x8xf32> to vector<2x4x2x8xf32>
    %cst_13 = arith.constant dense<0xFF800000> : vector<2x4x8xf32>
    %23 = vector.multi_reduction <maximumf>, %22, %cst_13 [2] : vector<2x4x2x8xf32> to vector<2x4x8xf32>
    %24 = vector.shape_cast %23 : vector<2x4x8xf32> to vector<8x8xf32>
    %cst_14 = arith.constant dense<0.000000e+00> : vector<8x96xf32>
    %25 = tpu.matmul %24, %2, %cst_14 {dimension_numbers = #tpu.dot_dimension_numbers<[1], [0], [0], [1], [0, 0, 1, 1], [], []>} : vector<8x8xf32>, vector<8x96xf32>, vector<8x96xf32> -> vector<8x96xf32>
    %26 = vector.broadcast %4 : vector<1x96xf32> to vector<8x96xf32>
    %27 = arith.addf %25, %26 : vector<8x96xf32>
    %28 = vector.shape_cast %27 : vector<8x96xf32> to vector<2x4x96xf32>
    %29 = vector.extract_strided_slice %28 {offsets = [0, 0, 0], sizes = [2, 4, 32], strides = [1, 1, 1]} : vector<2x4x96xf32> to vector<2x4x32xf32>
    %30 = vector.extract_strided_slice %28 {offsets = [0, 0, 32], sizes = [2, 4, 32], strides = [1, 1, 1]} : vector<2x4x96xf32> to vector<2x4x32xf32>
    %31 = vector.extract_strided_slice %28 {offsets = [0, 0, 64], sizes = [2, 4, 32], strides = [1, 1, 1]} : vector<2x4x96xf32> to vector<2x4x32xf32>
    %32 = vector.shape_cast %5 : vector<1x32xf32> to vector<1x32xf32>
    %33 = vector.broadcast %32 : vector<1x32xf32> to vector<2x32xf32>
    %cst_15 = arith.constant 0.000000e+00 : f32
    %34 = vector.broadcast %cst_15 : f32 to vector<2x32xf32>
    %cst_16 = arith.constant dense<0.000000e+00> : vector<2x96xf32>
    %35 = tpu.matmul %34, %3, %cst_16 {dimension_numbers = #tpu.dot_dimension_numbers<[1], [0], [0], [1], [0, 0, 1, 1], [], []>} : vector<2x32xf32>, vector<32x96xf32>, vector<2x96xf32> -> vector<2x96xf32>
    %36 = vector.extract_strided_slice %29 {offsets = [0, 0, 0], sizes = [2, 1, 32], strides = [1, 1, 1]} : vector<2x4x32xf32> to vector<2x1x32xf32>
    %37 = vector.shape_cast %36 : vector<2x1x32xf32> to vector<2x32xf32>
    %38 = vector.extract_strided_slice %35 {offsets = [0, 0], sizes = [2, 32], strides = [1, 1]} : vector<2x96xf32> to vector<2x32xf32>
    %39 = arith.addf %37, %38 : vector<2x32xf32>
    %cst_17 = arith.constant 5.000000e-01 : f32
    %40 = vector.broadcast %cst_17 : f32 to vector<2x32xf32>
    %41 = arith.mulf %40, %39 : vector<2x32xf32>
    %42 = math.tanh %41 : vector<2x32xf32>
    %cst_18 = arith.constant 5.000000e-01 : f32
    %43 = vector.broadcast %cst_18 : f32 to vector<2x32xf32>
    %44 = arith.mulf %43, %42 : vector<2x32xf32>
    %cst_19 = arith.constant 5.000000e-01 : f32
    %45 = vector.broadcast %cst_19 : f32 to vector<2x32xf32>
    %46 = arith.addf %44, %45 : vector<2x32xf32>
    %47 = vector.extract_strided_slice %30 {offsets = [0, 0, 0], sizes = [2, 1, 32], strides = [1, 1, 1]} : vector<2x4x32xf32> to vector<2x1x32xf32>
    %48 = vector.shape_cast %47 : vector<2x1x32xf32> to vector<2x32xf32>
    %49 = vector.extract_strided_slice %35 {offsets = [0, 32], sizes = [2, 32], strides = [1, 1]} : vector<2x96xf32> to vector<2x32xf32>
    %50 = arith.addf %48, %49 : vector<2x32xf32>
    %cst_20 = arith.constant 5.000000e-01 : f32
    %51 = vector.broadcast %cst_20 : f32 to vector<2x32xf32>
    %52 = arith.mulf %51, %50 : vector<2x32xf32>
    %53 = math.tanh %52 : vector<2x32xf32>
    %cst_21 = arith.constant 5.000000e-01 : f32
    %54 = vector.broadcast %cst_21 : f32 to vector<2x32xf32>
    %55 = arith.mulf %54, %53 : vector<2x32xf32>
    %cst_22 = arith.constant 5.000000e-01 : f32
    %56 = vector.broadcast %cst_22 : f32 to vector<2x32xf32>
    %57 = arith.addf %55, %56 : vector<2x32xf32>
    %58 = vector.extract_strided_slice %31 {offsets = [0, 0, 0], sizes = [2, 1, 32], strides = [1, 1, 1]} : vector<2x4x32xf32> to vector<2x1x32xf32>
    %59 = vector.shape_cast %58 : vector<2x1x32xf32> to vector<2x32xf32>
    %60 = vector.extract_strided_slice %35 {offsets = [0, 64], sizes = [2, 32], strides = [1, 1]} : vector<2x96xf32> to vector<2x32xf32>
    %61 = arith.addf %60, %33 : vector<2x32xf32>
    %62 = arith.mulf %46, %61 : vector<2x32xf32>
    %63 = arith.addf %59, %62 : vector<2x32xf32>
    %64 = math.tanh %63 : vector<2x32xf32>
    %cst_23 = arith.constant 1.000000e+00 : f32
    %65 = vector.broadcast %cst_23 : f32 to vector<2x32xf32>
    %66 = arith.subf %65, %57 : vector<2x32xf32>
    %67 = arith.mulf %66, %64 : vector<2x32xf32>
    %68 = arith.mulf %57, %34 : vector<2x32xf32>
    %69 = arith.addf %67, %68 : vector<2x32xf32>
    %cst_24 = arith.constant dense<0.000000e+00> : vector<2x96xf32>
    %70 = tpu.matmul %69, %3, %cst_24 {dimension_numbers = #tpu.dot_dimension_numbers<[1], [0], [0], [1], [0, 0, 1, 1], [], []>} : vector<2x32xf32>, vector<32x96xf32>, vector<2x96xf32> -> vector<2x96xf32>
    %71 = vector.extract_strided_slice %29 {offsets = [0, 1, 0], sizes = [2, 1, 32], strides = [1, 1, 1]} : vector<2x4x32xf32> to vector<2x1x32xf32>
    %72 = vector.shape_cast %71 : vector<2x1x32xf32> to vector<2x32xf32>
    %73 = vector.extract_strided_slice %70 {offsets = [0, 0], sizes = [2, 32], strides = [1, 1]} : vector<2x96xf32> to vector<2x32xf32>
    %74 = arith.addf %72, %73 : vector<2x32xf32>
    %cst_25 = arith.constant 5.000000e-01 : f32
    %75 = vector.broadcast %cst_25 : f32 to vector<2x32xf32>
    %76 = arith.mulf %75, %74 : vector<2x32xf32>
    %77 = math.tanh %76 : vector<2x32xf32>
    %cst_26 = arith.constant 5.000000e-01 : f32
    %78 = vector.broadcast %cst_26 : f32 to vector<2x32xf32>
    %79 = arith.mulf %78, %77 : vector<2x32xf32>
    %cst_27 = arith.constant 5.000000e-01 : f32
    %80 = vector.broadcast %cst_27 : f32 to vector<2x32xf32>
    %81 = arith.addf %79, %80 : vector<2x32xf32>
    %82 = vector.extract_strided_slice %30 {offsets = [0, 1, 0], sizes = [2, 1, 32], strides = [1, 1, 1]} : vector<2x4x32xf32> to vector<2x1x32xf32>
    %83 = vector.shape_cast %82 : vector<2x1x32xf32> to vector<2x32xf32>
    %84 = vector.extract_strided_slice %70 {offsets = [0, 32], sizes = [2, 32], strides = [1, 1]} : vector<2x96xf32> to vector<2x32xf32>
    %85 = arith.addf %83, %84 : vector<2x32xf32>
    %cst_28 = arith.constant 5.000000e-01 : f32
    %86 = vector.broadcast %cst_28 : f32 to vector<2x32xf32>
    %87 = arith.mulf %86, %85 : vector<2x32xf32>
    %88 = math.tanh %87 : vector<2x32xf32>
    %cst_29 = arith.constant 5.000000e-01 : f32
    %89 = vector.broadcast %cst_29 : f32 to vector<2x32xf32>
    %90 = arith.mulf %89, %88 : vector<2x32xf32>
    %cst_30 = arith.constant 5.000000e-01 : f32
    %91 = vector.broadcast %cst_30 : f32 to vector<2x32xf32>
    %92 = arith.addf %90, %91 : vector<2x32xf32>
    %93 = vector.extract_strided_slice %31 {offsets = [0, 1, 0], sizes = [2, 1, 32], strides = [1, 1, 1]} : vector<2x4x32xf32> to vector<2x1x32xf32>
    %94 = vector.shape_cast %93 : vector<2x1x32xf32> to vector<2x32xf32>
    %95 = vector.extract_strided_slice %70 {offsets = [0, 64], sizes = [2, 32], strides = [1, 1]} : vector<2x96xf32> to vector<2x32xf32>
    %96 = arith.addf %95, %33 : vector<2x32xf32>
    %97 = arith.mulf %81, %96 : vector<2x32xf32>
    %98 = arith.addf %94, %97 : vector<2x32xf32>
    %99 = math.tanh %98 : vector<2x32xf32>
    %cst_31 = arith.constant 1.000000e+00 : f32
    %100 = vector.broadcast %cst_31 : f32 to vector<2x32xf32>
    %101 = arith.subf %100, %92 : vector<2x32xf32>
    %102 = arith.mulf %101, %99 : vector<2x32xf32>
    %103 = arith.mulf %92, %69 : vector<2x32xf32>
    %104 = arith.addf %102, %103 : vector<2x32xf32>
    %cst_32 = arith.constant dense<0.000000e+00> : vector<2x96xf32>
    %105 = tpu.matmul %104, %3, %cst_32 {dimension_numbers = #tpu.dot_dimension_numbers<[1], [0], [0], [1], [0, 0, 1, 1], [], []>} : vector<2x32xf32>, vector<32x96xf32>, vector<2x96xf32> -> vector<2x96xf32>
    %106 = vector.extract_strided_slice %29 {offsets = [0, 2, 0], sizes = [2, 1, 32], strides = [1, 1, 1]} : vector<2x4x32xf32> to vector<2x1x32xf32>
    %107 = vector.shape_cast %106 : vector<2x1x32xf32> to vector<2x32xf32>
    %108 = vector.extract_strided_slice %105 {offsets = [0, 0], sizes = [2, 32], strides = [1, 1]} : vector<2x96xf32> to vector<2x32xf32>
    %109 = arith.addf %107, %108 : vector<2x32xf32>
    %cst_33 = arith.constant 5.000000e-01 : f32
    %110 = vector.broadcast %cst_33 : f32 to vector<2x32xf32>
    %111 = arith.mulf %110, %109 : vector<2x32xf32>
    %112 = math.tanh %111 : vector<2x32xf32>
    %cst_34 = arith.constant 5.000000e-01 : f32
    %113 = vector.broadcast %cst_34 : f32 to vector<2x32xf32>
    %114 = arith.mulf %113, %112 : vector<2x32xf32>
    %cst_35 = arith.constant 5.000000e-01 : f32
    %115 = vector.broadcast %cst_35 : f32 to vector<2x32xf32>
    %116 = arith.addf %114, %115 : vector<2x32xf32>
    %117 = vector.extract_strided_slice %30 {offsets = [0, 2, 0], sizes = [2, 1, 32], strides = [1, 1, 1]} : vector<2x4x32xf32> to vector<2x1x32xf32>
    %118 = vector.shape_cast %117 : vector<2x1x32xf32> to vector<2x32xf32>
    %119 = vector.extract_strided_slice %105 {offsets = [0, 32], sizes = [2, 32], strides = [1, 1]} : vector<2x96xf32> to vector<2x32xf32>
    %120 = arith.addf %118, %119 : vector<2x32xf32>
    %cst_36 = arith.constant 5.000000e-01 : f32
    %121 = vector.broadcast %cst_36 : f32 to vector<2x32xf32>
    %122 = arith.mulf %121, %120 : vector<2x32xf32>
    %123 = math.tanh %122 : vector<2x32xf32>
    %cst_37 = arith.constant 5.000000e-01 : f32
    %124 = vector.broadcast %cst_37 : f32 to vector<2x32xf32>
    %125 = arith.mulf %124, %123 : vector<2x32xf32>
    %cst_38 = arith.constant 5.000000e-01 : f32
    %126 = vector.broadcast %cst_38 : f32 to vector<2x32xf32>
    %127 = arith.addf %125, %126 : vector<2x32xf32>
    %128 = vector.extract_strided_slice %31 {offsets = [0, 2, 0], sizes = [2, 1, 32], strides = [1, 1, 1]} : vector<2x4x32xf32> to vector<2x1x32xf32>
    %129 = vector.shape_cast %128 : vector<2x1x32xf32> to vector<2x32xf32>
    %130 = vector.extract_strided_slice %105 {offsets = [0, 64], sizes = [2, 32], strides = [1, 1]} : vector<2x96xf32> to vector<2x32xf32>
    %131 = arith.addf %130, %33 : vector<2x32xf32>
    %132 = arith.mulf %116, %131 : vector<2x32xf32>
    %133 = arith.addf %129, %132 : vector<2x32xf32>
    %134 = math.tanh %133 : vector<2x32xf32>
    %cst_39 = arith.constant 1.000000e+00 : f32
    %135 = vector.broadcast %cst_39 : f32 to vector<2x32xf32>
    %136 = arith.subf %135, %127 : vector<2x32xf32>
    %137 = arith.mulf %136, %134 : vector<2x32xf32>
    %138 = arith.mulf %127, %104 : vector<2x32xf32>
    %139 = arith.addf %137, %138 : vector<2x32xf32>
    %cst_40 = arith.constant dense<0.000000e+00> : vector<2x96xf32>
    %140 = tpu.matmul %139, %3, %cst_40 {dimension_numbers = #tpu.dot_dimension_numbers<[1], [0], [0], [1], [0, 0, 1, 1], [], []>} : vector<2x32xf32>, vector<32x96xf32>, vector<2x96xf32> -> vector<2x96xf32>
    %141 = vector.extract_strided_slice %29 {offsets = [0, 3, 0], sizes = [2, 1, 32], strides = [1, 1, 1]} : vector<2x4x32xf32> to vector<2x1x32xf32>
    %142 = vector.shape_cast %141 : vector<2x1x32xf32> to vector<2x32xf32>
    %143 = vector.extract_strided_slice %140 {offsets = [0, 0], sizes = [2, 32], strides = [1, 1]} : vector<2x96xf32> to vector<2x32xf32>
    %144 = arith.addf %142, %143 : vector<2x32xf32>
    %cst_41 = arith.constant 5.000000e-01 : f32
    %145 = vector.broadcast %cst_41 : f32 to vector<2x32xf32>
    %146 = arith.mulf %145, %144 : vector<2x32xf32>
    %147 = math.tanh %146 : vector<2x32xf32>
    %cst_42 = arith.constant 5.000000e-01 : f32
    %148 = vector.broadcast %cst_42 : f32 to vector<2x32xf32>
    %149 = arith.mulf %148, %147 : vector<2x32xf32>
    %cst_43 = arith.constant 5.000000e-01 : f32
    %150 = vector.broadcast %cst_43 : f32 to vector<2x32xf32>
    %151 = arith.addf %149, %150 : vector<2x32xf32>
    %152 = vector.extract_strided_slice %30 {offsets = [0, 3, 0], sizes = [2, 1, 32], strides = [1, 1, 1]} : vector<2x4x32xf32> to vector<2x1x32xf32>
    %153 = vector.shape_cast %152 : vector<2x1x32xf32> to vector<2x32xf32>
    %154 = vector.extract_strided_slice %140 {offsets = [0, 32], sizes = [2, 32], strides = [1, 1]} : vector<2x96xf32> to vector<2x32xf32>
    %155 = arith.addf %153, %154 : vector<2x32xf32>
    %cst_44 = arith.constant 5.000000e-01 : f32
    %156 = vector.broadcast %cst_44 : f32 to vector<2x32xf32>
    %157 = arith.mulf %156, %155 : vector<2x32xf32>
    %158 = math.tanh %157 : vector<2x32xf32>
    %cst_45 = arith.constant 5.000000e-01 : f32
    %159 = vector.broadcast %cst_45 : f32 to vector<2x32xf32>
    %160 = arith.mulf %159, %158 : vector<2x32xf32>
    %cst_46 = arith.constant 5.000000e-01 : f32
    %161 = vector.broadcast %cst_46 : f32 to vector<2x32xf32>
    %162 = arith.addf %160, %161 : vector<2x32xf32>
    %163 = vector.extract_strided_slice %31 {offsets = [0, 3, 0], sizes = [2, 1, 32], strides = [1, 1, 1]} : vector<2x4x32xf32> to vector<2x1x32xf32>
    %164 = vector.shape_cast %163 : vector<2x1x32xf32> to vector<2x32xf32>
    %165 = vector.extract_strided_slice %140 {offsets = [0, 64], sizes = [2, 32], strides = [1, 1]} : vector<2x96xf32> to vector<2x32xf32>
    %166 = arith.addf %165, %33 : vector<2x32xf32>
    %167 = arith.mulf %151, %166 : vector<2x32xf32>
    %168 = arith.addf %164, %167 : vector<2x32xf32>
    %169 = math.tanh %168 : vector<2x32xf32>
    %cst_47 = arith.constant 1.000000e+00 : f32
    %170 = vector.broadcast %cst_47 : f32 to vector<2x32xf32>
    %171 = arith.subf %170, %162 : vector<2x32xf32>
    %172 = arith.mulf %171, %169 : vector<2x32xf32>
    %173 = arith.mulf %162, %139 : vector<2x32xf32>
    %174 = arith.addf %172, %173 : vector<2x32xf32>
    %cst_48 = arith.constant dense<0.000000e+00> : vector<2x128xf32>
    %175 = tpu.matmul %174, %6, %cst_48 {dimension_numbers = #tpu.dot_dimension_numbers<[1], [0], [0], [1], [0, 0, 1, 1], [], []>} : vector<2x32xf32>, vector<32x128xf32>, vector<2x128xf32> -> vector<2x128xf32>
    %176 = vector.broadcast %7 : vector<1x128xf32> to vector<2x128xf32>
    %177 = arith.addf %175, %176 : vector<2x128xf32>
    %c0_49 = arith.constant 0 : index
    %c0_50 = arith.constant 0 : index
    %178 = vector.load %arg2[%c0_49, %c0_50] : memref<2x128xf32, #tpu.memory_space<vmem>>, vector<2x128xf32>
    tpu.vector_store %arg2[%c0_49, %c0_50], %177 {strides = array<i32>} : memref<2x128xf32, #tpu.memory_space<vmem>>, vector<2x128xf32>,
    return
  }
}

</mosaic_0001>

<llo_original>
// kernel: tpu_custom_call.1
$region0: #{tpu_custom_call.1}
  #allocation0 [shape = 'u32[]', space=smem, size = 0x4, offset = 0x4, fixed_abs, tag = 'smem constant byte address 0x4 - core index']
  #allocation1 [shape = 'u32[72,128]{1,0:T(1,128)}', space=vmem, size = 0x9000, scoped, tag = 'internal scratch']
  %s0 = inlined_call_operand.vmem [shape: f32[2,8,4], index: 0, kind: input, shape index: {}]
  %s1 = inlined_call_operand.hbm [shape: f32[120,128], index: 1, kind: input, shape index: {}]
  %s2 = inlined_call_operand.hbm [shape: f32[2,128], index: 2, kind: output, shape index: {}]
  %s3 = sld [smem:[#allocation0]]
  $region22: #{tpu_custom_call.1} parent=0
    _
  %s5 = ssub.s32 1, %s3
  %s6 = scalar_select 0, %s5, %s3
  $region1: #{tpu_custom_call.1} parent=0
    #allocation2 [shape = 'u8[61440]{0}', space=vmem, size = 0xf000, scoped, tag = 'input window, operand 1, single buffered']
    #allocation3 [shape = 's32[1]{0}', space=sflag, size = 0x4, scoped, tag = 'scoped memory for tpu_custom_call.1']
    #allocation4 [shape = 's32[1]{0}', space=sflag, size = 0x4, scoped, tag = 'scoped memory for tpu_custom_call.1']
    #allocation5 [shape = 'u8[1024]{0}', space=vmem, size = 0x400, scoped, tag = 'output window, operand 0, single buffered']
    %7 = vsyncpa [#allocation3], 0
    %8 = vsyncpa [#allocation4], 0
    // Predicated region
    $region2: #{tpu_custom_call.1} parent=1 // pred_check
      _
    $region3: #{tpu_custom_call.1} parent=1 // pred_check_branch
      %10 = sbr.rel (0) target = $region5
    $region4: #{tpu_custom_call.1} parent=1 // pred_region
      _
    $region5: #{tpu_custom_call.1} parent=1 // pred_fallthru
      _
    // Predicated region
    $region6: #{tpu_custom_call.1} parent=1 // pred_check
      _
    $region7: #{tpu_custom_call.1} parent=1 // pred_check_branch
      %12 = sbr.rel (0) target = $region9
    $region8: #{tpu_custom_call.1} parent=1 // pred_region
      %14 = vsyncadd [#allocation3], 0
      %s15 = sshll.u32 %s1, 4
      %s16 = int_to_ptr.hbm [resolvable:$true] %s15
      %s17 = sshll.u32 [#allocation2], 4
      %s18 = int_to_ptr.vmem [resolvable:$true] %s17
      %23 = dma.hbm_to_vmem [thread:$0]  %s16, 1920, %s18, [#allocation3], 128, 128, 8
    $region9: #{tpu_custom_call.1} parent=1 // pred_fallthru
      _
    // Predicated region
    $region10: #{tpu_custom_call.1} parent=1 // pred_check
      _
    $region11: #{tpu_custom_call.1} parent=1 // pred_check_branch
      %25 = sbr.rel (0) target = $region13
    $region12: #{tpu_custom_call.1} parent=1 // pred_region
      %27 = dma.done [#allocation3], 1920
    $region13: #{tpu_custom_call.1} parent=1 // pred_fallthru
      _
    %v28 = vld [vmem:[#allocation2] sm:$0xff]
    %v29 = vld [vmem:[#allocation2 + $0x8] sm:$0xf]
    %v30 = vld [vmem:[#allocation2 + $0x10] sm:$0x1]
    %v31 = vld [vmem:[#allocation2 + $0x18] sm:$0xff]
    %v32 = vld [vmem:[#allocation2 + $0x20] sm:$0xff]
    %v33 = vld [vmem:[#allocation2 + $0x28] sm:$0xff]
    %v34 = vld [vmem:[#allocation2 + $0x30] sm:$0xff]
    %v35 = vld [vmem:[#allocation2 + $0x38] sm:$0xff]
    %v36 = vld [vmem:[#allocation2 + $0x40] sm:$0x1]
    %v37 = vld [vmem:[#allocation2 + $0x48] sm:$0x1]
    %v38 = vld [vmem:[#allocation2 + $0x50] sm:$0xff]
    %v39 = vld [vmem:[#allocation2 + $0x58] sm:$0xff]
    %v40 = vld [vmem:[#allocation2 + $0x60] sm:$0xff]
    %v41 = vld [vmem:[#allocation2 + $0x68] sm:$0xff]
    %v42 = vld [vmem:[#allocation2 + $0x70] sm:$0x1]
    %v43 = vld [vmem:[%s0] sm:$0xff]
    %v44 = vld [vmem:[%s0 + $0x8] sm:$0xff]
    %v47 = vrot.slane %v43, 7
    %v48 = vrot.slane %v44, 7
    %vm51 = vcmask 1040384
    %v52 = vsel %vm51, 0.0, %v47
    %v53 = vsel %vm51, 0.0, %v48
    %v54 = vsel %vm51, %v47, 0.0
    %v55 = vsel %vm51, %v48, 0.0
    %vm60 = vcmask 1046528
    %v61 = vrot.slane %v52, 1
    %v62 = vrot.slane %v54, 1
    %v63 = vsel %vm60, %v61, %v62
    %v64 = vrot.slane %v53, 1
    %v65 = vrot.slane %v55, 1
    %v66 = vsel %vm60, %v64, %v65
    %67 = vrot.lane.b32.xlu0 %v63, 4
    %v68 = vpop.permute.xlu0 %67
    %69 = vrot.lane.b32.xlu0 %v66, 4
    %v70 = vpop.permute.xlu0 %69
    %vm73 = vcmask 1045504
    %v74 = vrot.slane %v52, 2
    %v75 = vrot.slane %v54, 2
    %v76 = vsel %vm73, %v74, %v75
    %v77 = vrot.slane %v53, 2
    %v78 = vrot.slane %v55, 2
    %v79 = vsel %vm73, %v77, %v78
    %80 = vrot.lane.b32.xlu0 %v76, 8
    %v81 = vpop.permute.xlu0 %80
    %82 = vrot.lane.b32.xlu0 %v79, 8
    %v83 = vpop.permute.xlu0 %82
    %vm86 = vcmask 31744
    %v87 = vsel %vm86, %v52, %v68
    %v88 = vsel %vm86, %v53, %v70
    %vm89 = vcmask 64512
    %v90 = vsel %vm89, %v87, %v81
    %v91 = vsel %vm89, %v88, %v83
    %v92 = vperm.slane %v30, 0
    %vm93 = vcmask 97280
    %v95 = vsel %vm93, %v90, 0
    %v98 = vsel %vm93, %v91, 0
    %vm100 = vcmask 1043456
    %v102 = vsel %vm100, %v29, 0
    %104 = vmatpush.msra.mxu0 0.0
    %105 = vmatpush.msra.mxu0 0.0
    %106 = vmatpush.msra.mxu0 0.0
    %107 = vmatpush.msra.mxu0 0.0
    %108 = vmatpush.msra.mxu0 0.0
    %109 = vmatpush.msra.mxu0 0.0
    %110 = vmatpush.msra.mxu0 0.0
    %111 = vmatpush.msra.mxu0 0.0
    %112 = vmatpush.msra.mxu0 0.0
    %113 = vmatpush.msra.mxu0 0.0
    %114 = vmatpush.msra.mxu0 0.0
    %115 = vmatpush.msra.mxu0 0.0
    %116 = vmatpush.msra.mxu0 0.0
    %117 = vmatpush.msra.mxu0 0.0
    %118 = vmatpush.msra.mxu0 %v102
    %119 = vmatpush.msra.mxu0 %v28
    %120 = vmatmul.f32.gmra.mxu0 %v95
    %v121 = vpop.f32.mrf.mxu0
    %v122 = vadd.f32 %v92, %v121
    %123 = vmatmul.f32.gmra.mxu0 %v98
    %v124 = vpop.f32.mrf.mxu0
    %v125 = vadd.f32 %v92, %v124
    %126 = vdwg.mxu0
    %v127 = vmax.f32 %v122, 0.0
    %v128 = vmax.f32 %v125, 0.0
    %v131 = vrot.slane %v127, 2
    %v132 = vrot.slane %v127, 4
    %v133 = vrot.slane %v127, 6
    %v134 = vrot.slane %v128, 2
    %v135 = vrot.slane %v128, 4
    %v136 = vrot.slane %v128, 6
    %vm143 = vcmask 58368
    %v144 = vsel %vm143, %v127, -inf
    %v145 = vrot.slane %v144, 4
    %v146 = vmax.f32 %v144, %v145
    %v147 = vrot.slane %v146, 2
    %v148 = vmax.f32 %v146, %v147
    %v149 = vrot.slane %v148, 1
    %v150 = vmax.f32 %v148, %v149
    %v151 = vsel %vm143, %v131, -inf
    %v152 = vrot.slane %v151, 4
    %v153 = vmax.f32 %v151, %v152
    %v154 = vrot.slane %v153, 2
    %v155 = vmax.f32 %v153, %v154
    %v156 = vrot.slane %v155, 1
    %v157 = vmax.f32 %v155, %v156
    %v158 = vsel %vm143, %v132, -inf
    %v159 = vrot.slane %v158, 4
    %v160 = vmax.f32 %v158, %v159
    %v161 = vrot.slane %v160, 2
    %v162 = vmax.f32 %v160, %v161
    %v163 = vrot.slane %v162, 1
    %v164 = vmax.f32 %v162, %v163
    %v165 = vsel %vm143, %v133, -inf
    %v166 = vrot.slane %v165, 4
    %v167 = vmax.f32 %v165, %v166
    %v168 = vrot.slane %v167, 2
    %v169 = vmax.f32 %v167, %v168
    %v170 = vrot.slane %v169, 1
    %v171 = vmax.f32 %v169, %v170
    %v172 = vsel %vm143, %v128, -inf
    %v173 = vrot.slane %v172, 4
    %v174 = vmax.f32 %v172, %v173
    %v175 = vrot.slane %v174, 2
    %v176 = vmax.f32 %v174, %v175
    %v177 = vrot.slane %v176, 1
    %v178 = vmax.f32 %v176, %v177
    %v179 = vsel %vm143, %v134, -inf
    %v180 = vrot.slane %v179, 4
    %v181 = vmax.f32 %v179, %v180
    %v182 = vrot.slane %v181, 2
    %v183 = vmax.f32 %v181, %v182
    %v184 = vrot.slane %v183, 1
    %v185 = vmax.f32 %v183, %v184
    %v186 = vsel %vm143, %v135, -inf
    %v187 = vrot.slane %v186, 4
    %v188 = vmax.f32 %v186, %v187
    %v189 = vrot.slane %v188, 2
    %v190 = vmax.f32 %v188, %v189
    %v191 = vrot.slane %v190, 1
    %v192 = vmax.f32 %v190, %v191
    %v193 = vsel %vm143, %v136, -inf
    %v194 = vrot.slane %v193, 4
    %v195 = vmax.f32 %v193, %v194
    %v196 = vrot.slane %v195, 2
    %v197 = vmax.f32 %v195, %v196
    %v198 = vrot.slane %v197, 1
    %v199 = vmax.f32 %v197, %v198
    %v200 = vperm.slane %v36, 0
    %vm209 = vcmask 1041409
    %v210 = vsel %vm209, %v157, %v150
    %vm211 = vcmask 1042434
    %v212 = vsel %vm211, %v164, %v210
    %vm213 = vcmask 1043459
    %v214 = vsel %vm213, %v171, %v212
    %vm215 = vcmask 1044484
    %v216 = vsel %vm215, %v178, %v214
    %vm217 = vcmask 1045509
    %v218 = vsel %vm217, %v185, %v216
    %vm219 = vcmask 1046534
    %v220 = vsel %vm219, %v192, %v218
    %vm221 = vcmask 1047559
    %v222 = vsel %vm221, %v199, %v220
    %v223 = vsel %vm89, %v222, 0
    %225 = vmatpush.msra.mxu0 0.0
    %226 = vmatpush.msra.mxu0 0.0
    %227 = vmatpush.msra.mxu0 0.0
    %228 = vmatpush.msra.mxu0 0.0
    %229 = vmatpush.msra.mxu0 0.0
    %230 = vmatpush.msra.mxu0 0.0
    %231 = vmatpush.msra.mxu0 0.0
    %232 = vmatpush.msra.mxu0 0.0
    %233 = vmatpush.msra.mxu0 0.0
    %234 = vmatpush.msra.mxu0 0.0
    %235 = vmatpush.msra.mxu0 0.0
    %236 = vmatpush.msra.mxu0 0.0
    %237 = vmatpush.msra.mxu0 0.0
    %238 = vmatpush.msra.mxu0 0.0
    %239 = vmatpush.msra.mxu0 0.0
    %240 = vmatpush.msra.mxu0 %v31
    %241 = vmatmul.f32.gmra.mxu0 %v223
    %v242 = vpop.f32.mrf.mxu0
    %v243 = vadd.f32 %v200, %v242
    %244 = vdwg.mxu0
    %v246 = vrot.slane %v243, 4
    %v248 = vperm.slane %v37, 0
    %vm249 = vcmask 261120
    %v251 = vsel %vm249, 0.0, 0
    %253 = vmatpush.msra.mxu0 0.0
    %254 = vmatpush.msra.mxu0 0.0
    %255 = vmatpush.msra.mxu0 0.0
    %256 = vmatpush.msra.mxu0 0.0
    %257 = vmatpush.msra.mxu0 0.0
    %258 = vmatpush.msra.mxu0 0.0
    %259 = vmatpush.msra.mxu0 0.0
    %260 = vmatpush.msra.mxu0 0.0
    %261 = vmatpush.msra.mxu0 0.0
    %262 = vmatpush.msra.mxu0 0.0
    %263 = vmatpush.msra.mxu0 0.0
    %264 = vmatpush.msra.mxu0 0.0
    %265 = vmatpush.msra.mxu0 %v35
    %266 = vmatpush.msra.mxu0 %v34
    %267 = vmatpush.msra.mxu0 %v33
    %268 = vmatpush.msra.mxu0 %v32
    %269 = vmatmul.f32.gmra.mxu0 %v251
    %v270 = vpop.f32.mrf.mxu0
    %v271 = vadd.f32 0.0, %v270
    %272 = vdwg.mxu0
    %v274 = vrot.slane %v271, 1
    %v277 = vadd.f32 %v243, %v271
    %v278 = vadd.f32 %v246, %v274
    %v279 = vmul.f32 %v277, 0.5
    %v280 = vmul.f32 %v278, 0.5
    %v281 = vtanh.pop %v279
    %v282 = vtanh.pop %v280
    %v283 = vmul.f32 %v281, 0.5
    %v284 = vmul.f32 %v282, 0.5
    %v285 = vadd.f32 %v283, 0.5
    %v286 = vadd.f32 %v284, 0.5
    %288 = vrot.lane.b32.xlu0 %v248, 64
    %v289 = vpop.permute.xlu0 %288
    %v291 = vadd.f32 %v271, %v289
    %v293 = vrot.slane %v291, 1
    %294 = vrot.lane.b32.xlu0 %v291, 64
    %v295 = vpop.permute.xlu0 %294
    %296 = vrot.lane.b32.xlu0 %v293, 64
    %v297 = vpop.permute.xlu0 %296
    %v300 = vmul.f32 %v285, %v295
    %v301 = vmul.f32 %v286, %v297
    %304 = vrot.lane.b32.xlu0 %v300, 64
    %v305 = vpop.permute.xlu0 %304
    %306 = vrot.lane.b32.xlu0 %v301, 64
    %v307 = vpop.permute.xlu0 %306
    %v310 = vadd.f32 %v243, %v305
    %v311 = vadd.f32 %v246, %v307
    %v312 = vtanh.pop %v310
    %v313 = vtanh.pop %v311
    %v314 = vsub.f32 1.0, %v285
    %v315 = vsub.f32 1.0, %v286
    %318 = vrot.lane.b32.xlu0 %v312, 96
    %v319 = vpop.permute.xlu0 %318
    %320 = vrot.lane.b32.xlu0 %v313, 96
    %v321 = vpop.permute.xlu0 %320
    %v324 = vmul.f32 %v314, %v319
    %v325 = vmul.f32 %v315, %v321
    %v326 = vmul.f32 %v285, 0.0
    %v327 = vmul.f32 %v286, 0.0
    %v328 = vadd.f32 %v324, %v326
    %v329 = vadd.f32 %v325, %v327
    %v332 = vperm.slane %v328, 0
    %v333 = vperm.slane %v329, 0
    %v334 = vsel %vm209, %v333, %v332
    %335 = vrot.lane.b32.xlu0 %v334, 96
    %v336 = vpop.permute.xlu0 %335
    %v337 = vsel %vm249, %v336, 0
    %339 = vmatpush.msra.mxu0 0.0
    %340 = vmatpush.msra.mxu0 0.0
    %341 = vmatpush.msra.mxu0 0.0
    %342 = vmatpush.msra.mxu0 0.0
    %343 = vmatpush.msra.mxu0 0.0
    %344 = vmatpush.msra.mxu0 0.0
    %345 = vmatpush.msra.mxu0 0.0
    %346 = vmatpush.msra.mxu0 0.0
    %347 = vmatpush.msra.mxu0 0.0
    %348 = vmatpush.msra.mxu0 0.0
    %349 = vmatpush.msra.mxu0 0.0
    %350 = vmatpush.msra.mxu0 0.0
    %351 = vmatpush.msra.mxu0 %v35
    %352 = vmatpush.msra.mxu0 %v34
    %353 = vmatpush.msra.mxu0 %v33
    %354 = vmatpush.msra.mxu0 %v32
    %355 = vmatmul.f32.gmra.mxu0 %v337
    %v356 = vpop.f32.mrf.mxu0
    %v357 = vadd.f32 0.0, %v356
    %358 = vdwg.mxu0
    %v360 = vrot.slane %v357, 7
    %v363 = vadd.f32 %v243, %v360
    %v364 = vadd.f32 %v246, %v357
    %v365 = vmul.f32 %v363, 0.5
    %v366 = vmul.f32 %v364, 0.5
    %v367 = vtanh.pop %v365
    %v368 = vtanh.pop %v366
    %v369 = vmul.f32 %v367, 0.5
    %v370 = vmul.f32 %v368, 0.5
    %v371 = vadd.f32 %v369, 0.5
    %v372 = vadd.f32 %v370, 0.5
    %v373 = vadd.f32 %v357, %v289
    %v375 = vrot.slane %v373, 7
    %376 = vrot.lane.b32.xlu0 %v375, 64
    %v377 = vpop.permute.xlu0 %376
    %378 = vrot.lane.b32.xlu0 %v373, 64
    %v379 = vpop.permute.xlu0 %378
    %v382 = vmul.f32 %v371, %v377
    %v383 = vmul.f32 %v372, %v379
    %386 = vrot.lane.b32.xlu0 %v382, 64
    %v387 = vpop.permute.xlu0 %386
    %388 = vrot.lane.b32.xlu0 %v383, 64
    %v389 = vpop.permute.xlu0 %388
    %v392 = vadd.f32 %v243, %v387
    %v393 = vadd.f32 %v246, %v389
    %v394 = vtanh.pop %v392
    %v395 = vtanh.pop %v393
    %v396 = vsub.f32 1.0, %v371
    %v397 = vsub.f32 1.0, %v372
    %400 = vrot.lane.b32.xlu0 %v394, 96
    %v401 = vpop.permute.xlu0 %400
    %402 = vrot.lane.b32.xlu0 %v395, 96
    %v403 = vpop.permute.xlu0 %402
    %v406 = vmul.f32 %v396, %v401
    %v407 = vmul.f32 %v397, %v403
    %v408 = vrot.slane %v328, 7
    %v409 = vrot.slane %v329, 7
    %v412 = vmul.f32 %v371, %v408
    %v413 = vmul.f32 %v372, %v409
    %v414 = vadd.f32 %v406, %v412
    %v415 = vadd.f32 %v407, %v413
    %v418 = vperm.slane %v414, 1
    %v419 = vperm.slane %v415, 1
    %v420 = vsel %vm209, %v419, %v418
    %421 = vrot.lane.b32.xlu0 %v420, 96
    %v422 = vpop.permute.xlu0 %421
    %v423 = vsel %vm249, %v422, 0
    %425 = vmatpush.msra.mxu0 0.0
    %426 = vmatpush.msra.mxu0 0.0
    %427 = vmatpush.msra.mxu0 0.0
    %428 = vmatpush.msra.mxu0 0.0
    %429 = vmatpush.msra.mxu0 0.0
    %430 = vmatpush.msra.mxu0 0.0
    %431 = vmatpush.msra.mxu0 0.0
    %432 = vmatpush.msra.mxu0 0.0
    %433 = vmatpush.msra.mxu0 0.0
    %434 = vmatpush.msra.mxu0 0.0
    %435 = vmatpush.msra.mxu0 0.0
    %436 = vmatpush.msra.mxu0 0.0
    %437 = vmatpush.msra.mxu0 %v35
    %438 = vmatpush.msra.mxu0 %v34
    %439 = vmatpush.msra.mxu0 %v33
    %440 = vmatpush.msra.mxu0 %v32
    %441 = vmatmul.f32.gmra.mxu0 %v423
    %v442 = vpop.f32.mrf.mxu0
    %v443 = vadd.f32 0.0, %v442
    %444 = vdwg.mxu0
    %v446 = vrot.slane %v443, 6
    %v447 = vrot.slane %v443, 7
    %v450 = vadd.f32 %v243, %v446
    %v451 = vadd.f32 %v246, %v447
    %v452 = vmul.f32 %v450, 0.5
    %v453 = vmul.f32 %v451, 0.5
    %v454 = vtanh.pop %v452
    %v455 = vtanh.pop %v453
    %v456 = vmul.f32 %v454, 0.5
    %v457 = vmul.f32 %v455, 0.5
    %v458 = vadd.f32 %v456, 0.5
    %v459 = vadd.f32 %v457, 0.5
    %v460 = vadd.f32 %v443, %v289
    %v462 = vrot.slane %v460, 6
    %v463 = vrot.slane %v460, 7
    %464 = vrot.lane.b32.xlu0 %v462, 64
    %v465 = vpop.permute.xlu0 %464
    %466 = vrot.lane.b32.xlu0 %v463, 64
    %v467 = vpop.permute.xlu0 %466
    %v470 = vmul.f32 %v458, %v465
    %v471 = vmul.f32 %v459, %v467
    %474 = vrot.lane.b32.xlu0 %v470, 64
    %v475 = vpop.permute.xlu0 %474
    %476 = vrot.lane.b32.xlu0 %v471, 64
    %v477 = vpop.permute.xlu0 %476
    %v480 = vadd.f32 %v243, %v475
    %v481 = vadd.f32 %v246, %v477
    %v482 = vtanh.pop %v480
    %v483 = vtanh.pop %v481
    %v484 = vsub.f32 1.0, %v458
    %v485 = vsub.f32 1.0, %v459
    %488 = vrot.lane.b32.xlu0 %v482, 96
    %v489 = vpop.permute.xlu0 %488
    %490 = vrot.lane.b32.xlu0 %v483, 96
    %v491 = vpop.permute.xlu0 %490
    %v494 = vmul.f32 %v484, %v489
    %v495 = vmul.f32 %v485, %v491
    %v496 = vrot.slane %v414, 7
    %v497 = vrot.slane %v415, 7
    %v500 = vmul.f32 %v458, %v496
    %v501 = vmul.f32 %v459, %v497
    %v502 = vadd.f32 %v494, %v500
    %v503 = vadd.f32 %v495, %v501
    %v506 = vperm.slane %v502, 2
    %v507 = vperm.slane %v503, 2
    %v508 = vsel %vm209, %v507, %v506
    %509 = vrot.lane.b32.xlu0 %v508, 96
    %v510 = vpop.permute.xlu0 %509
    %v511 = vsel %vm249, %v510, 0
    %513 = vmatpush.msra.mxu0 0.0
    %514 = vmatpush.msra.mxu0 0.0
    %515 = vmatpush.msra.mxu0 0.0
    %516 = vmatpush.msra.mxu0 0.0
    %517 = vmatpush.msra.mxu0 0.0
    %518 = vmatpush.msra.mxu0 0.0
    %519 = vmatpush.msra.mxu0 0.0
    %520 = vmatpush.msra.mxu0 0.0
    %521 = vmatpush.msra.mxu0 0.0
    %522 = vmatpush.msra.mxu0 0.0
    %523 = vmatpush.msra.mxu0 0.0
    %524 = vmatpush.msra.mxu0 0.0
    %525 = vmatpush.msra.mxu0 %v35
    %526 = vmatpush.msra.mxu0 %v34
    %527 = vmatpush.msra.mxu0 %v33
    %528 = vmatpush.msra.mxu0 %v32
    %529 = vmatmul.f32.gmra.mxu0 %v511
    %v530 = vpop.f32.mrf.mxu0
    %v531 = vadd.f32 0.0, %v530
    %532 = vdwg.mxu0
    %v534 = vrot.slane %v531, 5
    %v535 = vrot.slane %v531, 6
    %v538 = vadd.f32 %v243, %v534
    %v539 = vadd.f32 %v246, %v535
    %v540 = vmul.f32 %v538, 0.5
    %v541 = vmul.f32 %v539, 0.5
    %v542 = vtanh.pop %v540
    %v543 = vtanh.pop %v541
    %v544 = vmul.f32 %v542, 0.5
    %v545 = vmul.f32 %v543, 0.5
    %v546 = vadd.f32 %v544, 0.5
    %v547 = vadd.f32 %v545, 0.5
    %v548 = vadd.f32 %v531, %v289
    %v550 = vrot.slane %v548, 5
    %v551 = vrot.slane %v548, 6
    %552 = vrot.lane.b32.xlu0 %v550, 64
    %v553 = vpop.permute.xlu0 %552
    %554 = vrot.lane.b32.xlu0 %v551, 64
    %v555 = vpop.permute.xlu0 %554
    %v558 = vmul.f32 %v546, %v553
    %v559 = vmul.f32 %v547, %v555
    %562 = vrot.lane.b32.xlu0 %v558, 64
    %v563 = vpop.permute.xlu0 %562
    %564 = vrot.lane.b32.xlu0 %v559, 64
    %v565 = vpop.permute.xlu0 %564
    %v568 = vadd.f32 %v243, %v563
    %v569 = vadd.f32 %v246, %v565
    %v570 = vtanh.pop %v568
    %v571 = vtanh.pop %v569
    %v572 = vsub.f32 1.0, %v546
    %v573 = vsub.f32 1.0, %v547
    %576 = vrot.lane.b32.xlu0 %v570, 96
    %v577 = vpop.permute.xlu0 %576
    %578 = vrot.lane.b32.xlu0 %v571, 96
    %v579 = vpop.permute.xlu0 %578
    %v582 = vmul.f32 %v572, %v577
    %v583 = vmul.f32 %v573, %v579
    %v584 = vrot.slane %v502, 7
    %v585 = vrot.slane %v503, 7
    %v588 = vmul.f32 %v546, %v584
    %v589 = vmul.f32 %v547, %v585
    %v590 = vadd.f32 %v582, %v588
    %v591 = vadd.f32 %v583, %v589
    %v592 = vperm.slane %v42, 0
    %v595 = vperm.slane %v590, 3
    %v596 = vperm.slane %v591, 3
    %v597 = vsel %vm209, %v596, %v595
    %598 = vrot.lane.b32.xlu0 %v597, 96
    %v599 = vpop.permute.xlu0 %598
    %v600 = vsel %vm249, %v599, 0
    %602 = vmatpush.msra.mxu0 0.0
    %603 = vmatpush.msra.mxu0 0.0
    %604 = vmatpush.msra.mxu0 0.0
    %605 = vmatpush.msra.mxu0 0.0
    %606 = vmatpush.msra.mxu0 0.0
    %607 = vmatpush.msra.mxu0 0.0
    %608 = vmatpush.msra.mxu0 0.0
    %609 = vmatpush.msra.mxu0 0.0
    %610 = vmatpush.msra.mxu0 0.0
    %611 = vmatpush.msra.mxu0 0.0
    %612 = vmatpush.msra.mxu0 0.0
    %613 = vmatpush.msra.mxu0 0.0
    %614 = vmatpush.msra.mxu0 %v41
    %615 = vmatpush.msra.mxu0 %v40
    %616 = vmatpush.msra.mxu0 %v39
    %617 = vmatpush.msra.mxu0 %v38
    %618 = vmatmul.f32.gmra.mxu0 %v600
    %v619 = vpop.f32.mrf.mxu0
    %v620 = vadd.f32 %v592, %v619
    %621 = vdwg.mxu0
    %622 = vst [vmem:[#allocation5] sm:$0x3] %v620
    // Predicated region
    $region14: #{tpu_custom_call.1} parent=1 // pred_check
      _
    $region15: #{tpu_custom_call.1} parent=1 // pred_check_branch
      %624 = sbr.rel (0) target = $region17
    $region16: #{tpu_custom_call.1} parent=1 // pred_region
      %626 = vsyncadd [#allocation4], 0
      %s628 = sshll.u32 [#allocation5], 4
      %s629 = int_to_ptr.vmem [resolvable:$true] %s628
      %s630 = sshll.u32 %s2, 4
      %s631 = int_to_ptr.hbm [resolvable:$true] %s630
      %633 = dma.vmem_to_hbm [thread:$0]  %s629, 32, %s631, [#allocation4]
    $region17: #{tpu_custom_call.1} parent=1 // pred_fallthru
      _
    // Predicated region
    $region18: #{tpu_custom_call.1} parent=1 // pred_check
      _
    $region19: #{tpu_custom_call.1} parent=1 // pred_check_branch
      %635 = sbr.rel (0) target = $region21
    $region20: #{tpu_custom_call.1} parent=1 // pred_region
      %637 = dma.done [#allocation4], 32
    $region21: #{tpu_custom_call.1} parent=1 // pred_fallthru
      _
    %638 = vsyncpa [#allocation3], 1
    %639 = vsyncpa [#allocation4], 1

</llo_original>
